<compile_context>
chip_gen: v6e
topology: v6e:2x2x1
jax: 0.10.0
libtpu: 0.0.40
codegen_flags: <defaults>
</compile_context>

<pallas_src>
import functools
import numpy as np
import jax
import jax.numpy as jnp
from jax.experimental import pallas as pl
from jax.experimental.pallas import tpu as pltpu


# ----------------------------------------------------------------------------
# Per-generation tiling / VMEM configuration
# ----------------------------------------------------------------------------

def _tile_config():
    try:
        kind = jax.devices()[0].device_kind.lower()
    except Exception:
        kind = ""
    if "v6" in kind:      # v6e: 2x256 MXU, 128 MiB physical VMEM
        return dict(tm=512, tn=256, tk=512, k_full=3072, vmem=96 * 1024 * 1024)
    if "v5" in kind:      # v5e/v5p: 128 MiB physical VMEM, lowest HBM BW
        return dict(tm=512, tn=256, tk=512, k_full=3072, vmem=96 * 1024 * 1024)
    # v7x & unknown: 64 MiB physical VMEM per core -> conservative scoped limit
    return dict(tm=256, tn=256, tk=512, k_full=2048, vmem=48 * 1024 * 1024)


_CFG = _tile_config()
_N_FULL_MAX = 512          # keep N as one full-extent block up to this width


def _compiler_params(dims):
    return pltpu.CompilerParams(dimension_semantics=dims,
                                vmem_limit_bytes=_CFG["vmem"])


def _round_up(x, m):
    return (x + m - 1) // m * m


def _row_tile(m):
    mp = _round_up(m, 8)
    if mp <= _CFG["tm"]:
        return mp, mp
    tm = _CFG["tm"]
    return tm, _round_up(m, tm)


def _apply_activation(x, activation):
    if activation == "relu":
        return jnp.maximum(x, 0.0)
    if activation == "gelu":
        # TODO(synk): exact erf-GELU (nn.GELU default) replaced by the tanh
        # approximation so it can be fused in-kernel (tanh -> EUP slot).
        return 0.5 * x * (1.0 + jnp.tanh(0.7978845608028654 *
                                         (x + 0.044715 * x * x * x)))
    return x


# ----------------------------------------------------------------------------
# Pallas kernels
# ----------------------------------------------------------------------------

def _mm_kernel(a_ref, b_ref, bias_ref, o_ref, acc_ref, *, activation):
    @pl.when(pl.program_id(2) == 0)
    def _():
        acc_ref[...] = jnp.zeros_like(acc_ref)

    acc_ref[...] += jnp.dot(a_ref[...], b_ref[...],
                            preferred_element_type=jnp.float32)

    @pl.when(pl.program_id(2) == pl.num_programs(2) - 1)
    def _():
        out = _apply_activation(acc_ref[...] + bias_ref[...], activation)
        o_ref[...] = out.astype(o_ref.dtype)


def _norm_mm_kernel(a_ref, g_ref, be_ref, b_ref, bias_ref, o_ref, a_sc,
                    *, eps, activation):
    # LayerNorm computed once per row tile (first N tile) and cached in bf16.
    @pl.when(pl.program_id(1) == 0)
    def _():
        a = a_ref[...].astype(jnp.float32)
        mu = jnp.mean(a, axis=-1, keepdims=True)
        var = jnp.mean(jnp.square(a - mu), axis=-1, keepdims=True)
        a = (a - mu) * jax.lax.rsqrt(var + eps)
        a = a * g_ref[...] + be_ref[...]
        a_sc[...] = a.astype(jnp.bfloat16)

    out = jnp.dot(a_sc[...], b_ref[...], preferred_element_type=jnp.float32)
    out = _apply_activation(out + bias_ref[...], activation)
    o_ref[...] = out.astype(o_ref.dtype)


def _fused_norm_project_kernel(*refs, num_feats, eps):
    a_refs = refs[:num_feats]
    g_ref, be_ref, w_ref, bias_ref, o_ref = refs[num_feats:]
    gamma = g_ref[...]
    beta = be_ref[...]
    acc = None
    for f in range(num_feats):
        a = a_refs[f][...].astype(jnp.float32)
        mu = jnp.mean(a, axis=-1, keepdims=True)
        var = jnp.mean(jnp.square(a - mu), axis=-1, keepdims=True)
        a = (a - mu) * jax.lax.rsqrt(var + eps) * gamma + beta
        d = jnp.dot(a.astype(jnp.bfloat16), w_ref[f],
                    preferred_element_type=jnp.float32)
        acc = d if acc is None else acc + d
    o_ref[...] = (acc + bias_ref[...]).astype(o_ref.dtype)


def _attn_kernel(q_ref, k_ref, v_ref, o_ref, *, heads, dh, scale, kv_chunk):
    n = q_ref.shape[1]
    q_all = q_ref[0]
    k_all = k_ref[0]
    v_all = v_ref[0]
    outs = []
    for h in range(heads):
        q = q_all[:, h * dh:(h + 1) * dh]
        m = jnp.full((n, 1), -jnp.inf, dtype=jnp.float32)
        l = jnp.zeros((n, 1), dtype=jnp.float32)
        acc = jnp.zeros((n, dh), dtype=jnp.float32)
        # Online softmax over KV chunks (bounds the score tile in VMEM).
        for c0 in range(0, n, kv_chunk):
            c1 = min(c0 + kv_chunk, n)
            kh = k_all[c0:c1, h * dh:(h + 1) * dh]
            vh = v_all[c0:c1, h * dh:(h + 1) * dh]
            s = jax.lax.dot_general(q, kh, (((1,), (1,)), ((), ())),
                                    preferred_element_type=jnp.float32) * scale
            m_new = jnp.maximum(m, jnp.max(s, axis=-1, keepdims=True))
            alpha = jnp.exp(m - m_new)
            p = jnp.exp(s - m_new)
            l = alpha * l + jnp.sum(p, axis=-1, keepdims=True)
            acc = alpha * acc + jnp.dot(p.astype(jnp.bfloat16), vh,
                                        preferred_element_type=jnp.float32)
            m = m_new
        outs.append(acc / l)
    o = outs[0] if len(outs) == 1 else jnp.concatenate(outs, axis=-1)
    o_ref[0] = o.astype(o_ref.dtype)


def _gn_kernel(x_ref, g_ref, b_ref, o_ref, sum_ref, sq_ref,
               *, eps, relu, n_valid):
    p = pl.program_id(1)
    t = pl.program_id(2)

    @pl.when((p == 0) & (t == 0))
    def _():
        sum_ref[...] = jnp.zeros_like(sum_ref)
        sq_ref[...] = jnp.zeros_like(sq_ref)

    x = x_ref[0].astype(jnp.float32)                    # (tr, C)

    @pl.when(p == 0)
    def _():
        sum_ref[...] += jnp.sum(x, axis=0, keepdims=True)
        sq_ref[...] += jnp.sum(x * x, axis=0, keepdims=True)

    @pl.when(p == 1)
    def _():
        mu = jnp.sum(sum_ref[...], axis=1, keepdims=True) / n_valid
        var = jnp.sum(sq_ref[...], axis=1, keepdims=True) / n_valid - mu * mu
        y = (x - mu) * jax.lax.rsqrt(var + eps)
        y = y * g_ref[...] + b_ref[...]
        if relu:
            y = jnp.maximum(y, 0.0)
        o_ref[0] = y.astype(o_ref.dtype)


def _conv3x3_kernel(x_ref, w_ref, b_ref, o_ref, *, th, width, activation):
    bias = b_ref[...]

    def row(r, carry):
        acc = None
        for dh in range(3):
            line = x_ref[0, 0, r + dh]                    # (W+2, C) bf16
            for dw in range(3):
                part = jnp.dot(line[dw:dw + width, :], w_ref[dh * 3 + dw],
                               preferred_element_type=jnp.float32)
                acc = part if acc is None else acc + part
        out = _apply_activation(acc + bias, activation)
        o_ref[0, 0, r] = out.astype(o_ref.dtype)
        return carry

    jax.lax.fori_loop(0, th, row, 0)


def _conv3x3_proj_kernel(x_ref, w_ref, b_ref, w2_ref, b2_ref, o_ref,
                         *, th, width, activation):
    bias = b_ref[...]
    w2 = w2_ref[...]
    b2 = b2_ref[...]

    def row(r, carry):
        acc = None
        for dh in range(3):
            line = x_ref[0, 0, r + dh]
            for dw in range(3):
                part = jnp.dot(line[dw:dw + width, :], w_ref[dh * 3 + dw],
                               preferred_element_type=jnp.float32)
                acc = part if acc is None else acc + part
        h = _apply_activation(acc + bias, activation)
        out = jnp.dot(h.astype(jnp.bfloat16), w2,
                      preferred_element_type=jnp.float32) + b2
        # TODO(synk): 4-channel output store is lane-sparse; could pack W*O2 on
        # the lane axis for dense vst at full resolution.
        o_ref[0, 0, r] = out.astype(o_ref.dtype)
        return carry

    jax.lax.fori_loop(0, th, row, 0)


# ----------------------------------------------------------------------------
# Kernel wrappers
# ----------------------------------------------------------------------------

def pallas_matmul(a, b, bias=None, activation="none", out_dtype=jnp.float32):
    """out = act(a @ b + bias); bf16 operands, f32 accumulation, M/N/K tiled.

    Non-divisible N/K are zero-padded to tile multiples (never a giant
    full-extent block); small N/K stay as a single full block."""
    M, K = a.shape
    K2, N = b.shape
    assert K == K2
    a = a.astype(jnp.bfloat16)
    b = b.astype(jnp.bfloat16)

    tm, Mp = _row_tile(M)
    if N <= _N_FULL_MAX:
        tn, Np = N, N
    else:
        tn = _CFG["tn"]
        Np = _round_up(N, tn)
    if K <= _CFG["k_full"]:
        tk, Kp = K, K
    else:
        tk = _CFG["tk"]
        Kp = _round_up(K, tk)

    if Mp != M or Kp != K:
        a = jnp.pad(a, ((0, Mp - M), (0, Kp - K)))
    if Kp != K or Np != N:
        b = jnp.pad(b, ((0, Kp - K), (0, Np - N)))
    if bias is None:
        bias_p = jnp.zeros((1, Np), jnp.float32)
    else:
        bias_p = bias.reshape(1, N).astype(jnp.float32)
        if Np != N:
            bias_p = jnp.pad(bias_p, ((0, 0), (0, Np - N)))

    grid = (Mp // tm, Np // tn, Kp // tk)
    out = pl.pallas_call(
        functools.partial(_mm_kernel, activation=activation),
        out_shape=jax.ShapeDtypeStruct((Mp, Np), out_dtype),
        grid=grid,
        in_specs=[
            pl.BlockSpec((tm, tk), lambda i, j, k: (i, k)),
            pl.BlockSpec((tk, tn), lambda i, j, k: (k, j)),
            pl.BlockSpec((1, tn), lambda i, j, k: (0, j)),
        ],
        out_specs=pl.BlockSpec((tm, tn), lambda i, j, k: (i, j)),
        scratch_shapes=[pltpu.VMEM((tm, tn), jnp.float32)],
        compiler_params=_compiler_params(("parallel", "parallel", "arbitrary")),
    )(a, b, bias_p)
    if Mp != M or Np != N:
        out = out[:M, :N]
    return out


def pallas_norm_matmul(a, b, bias, gamma, beta, eps=1e-6, activation="none",
                       out_dtype=jnp.float32):
    """out = act(LayerNorm(a; gamma, beta) @ b + bias); norm cached in scratch."""
    M, K = a.shape
    K2, N = b.shape
    assert K == K2
    a = a.astype(jnp.float32)
    tm, Mp = _row_tile(M)
    if Mp != M:
        a = jnp.pad(a, ((0, Mp - M), (0, 0)))
    if N <= _N_FULL_MAX:
        tn, Np = N, N
    else:
        tn = _CFG["tn"]
        Np = _round_up(N, tn)
    b = b.astype(jnp.bfloat16)
    if bias is None:
        bias = jnp.zeros((N,), jnp.float32)
    bias_p = bias.reshape(1, N).astype(jnp.float32)
    if Np != N:
        b = jnp.pad(b, ((0, 0), (0, Np - N)))
        bias_p = jnp.pad(bias_p, ((0, 0), (0, Np - N)))

    out = pl.pallas_call(
        functools.partial(_norm_mm_kernel, eps=eps, activation=activation),
        out_shape=jax.ShapeDtypeStruct((Mp, Np), out_dtype),
        grid=(Mp // tm, Np // tn),
        in_specs=[
            pl.BlockSpec((tm, K), lambda i, j: (i, 0)),
            pl.BlockSpec((1, K), lambda i, j: (0, 0)),
            pl.BlockSpec((1, K), lambda i, j: (0, 0)),
            pl.BlockSpec((K, tn), lambda i, j: (0, j)),
            pl.BlockSpec((1, tn), lambda i, j: (0, j)),
        ],
        out_specs=pl.BlockSpec((tm, tn), lambda i, j: (i, j)),
        scratch_shapes=[pltpu.VMEM((tm, K), jnp.bfloat16)],
        compiler_params=_compiler_params(("parallel", "arbitrary")),
    )(a, gamma.reshape(1, K).astype(jnp.float32),
      beta.reshape(1, K).astype(jnp.float32), b, bias_p)
    if Mp != M or Np != N:
        out = out[:M, :N]
    return out


def fused_norm_project(feats, gamma, beta, projects, eps=1e-6,
                       out_dtype=jnp.bfloat16):
    """Final backbone LayerNorm + per-feature 1x1 projection + sum, one kernel.
    Features are separate inputs (no stacked HBM copy)."""
    G = len(feats)
    B, Ntok, D = feats[0].shape
    M = B * Ntok
    P = projects[0]["w"].shape[1]
    a_list = [f.reshape(M, D).astype(jnp.float32) for f in feats]
    w = jnp.stack([pr["w"] for pr in projects], axis=0).astype(jnp.bfloat16)
    bias = sum(pr["b"] for pr in projects).reshape(1, P).astype(jnp.float32)

    tm, Mp = _row_tile(M)
    if Mp != M:
        a_list = [jnp.pad(a, ((0, Mp - M), (0, 0))) for a in a_list]

    in_specs = [pl.BlockSpec((tm, D), lambda i: (i, 0)) for _ in range(G)]
    in_specs += [
        pl.BlockSpec((1, D), lambda i: (0, 0)),
        pl.BlockSpec((1, D), lambda i: (0, 0)),
        pl.BlockSpec((G, D, P), lambda i: (0, 0, 0)),
        pl.BlockSpec((1, P), lambda i: (0, 0)),
    ]
    out = pl.pallas_call(
        functools.partial(_fused_norm_project_kernel, num_feats=G, eps=eps),
        out_shape=jax.ShapeDtypeStruct((Mp, P), out_dtype),
        grid=(Mp // tm,),
        in_specs=in_specs,
        out_specs=pl.BlockSpec((tm, P), lambda i: (i, 0)),
        compiler_params=_compiler_params(("parallel",)),
    )(*a_list, gamma.reshape(1, D).astype(jnp.float32),
      beta.reshape(1, D).astype(jnp.float32), w, bias)
    return out[:M] if Mp != M else out


def pallas_attention_fused(qkv, num_heads, dim):
    """Attention reading q/k/v straight from the fused qkv (B, N, 3D) tensor and
    writing a (B, N, D) output -- no XLA reshape/transpose round trips."""
    B, N, _ = qkv.shape
    dh = dim // num_heads
    # Pack heads so the lane block is a multiple of 128 when head_dim allows.
    hg = 0
    limit = max(1, 256 // dh)
    for d in range(min(num_heads, limit), 0, -1):
        if num_heads % d == 0 and (d * dh) % 128 == 0:
            hg = d
            break
    if hg:
        ng = num_heads // hg
        gw = hg * dh
        q_in = k_in = v_in = qkv
        q_map = lambda b, g: (b, 0, g)
        k_map = lambda b, g: (b, 0, ng + g)
        v_map = lambda b, g: (b, 0, 2 * ng + g)
    else:
        # Small-dim fallback (toy shapes): split q/k/v outside, full-D lane block.
        hg, ng, gw = num_heads, 1, dim
        q_in = qkv[:, :, :dim]
        k_in = qkv[:, :, dim:2 * dim]
        v_in = qkv[:, :, 2 * dim:]
        q_map = k_map = v_map = lambda b, g: (b, 0, 0)

    kv_chunk = min(N, 512)
    return pl.pallas_call(
        functools.partial(_attn_kernel, heads=hg, dh=dh, scale=dh ** -0.5,
                          kv_chunk=kv_chunk),
        out_shape=jax.ShapeDtypeStruct((B, N, dim), jnp.bfloat16),
        grid=(B, ng),
        in_specs=[pl.BlockSpec((1, N, gw), q_map),
                  pl.BlockSpec((1, N, gw), k_map),
                  pl.BlockSpec((1, N, gw), v_map)],
        out_specs=pl.BlockSpec((1, N, gw), lambda b, g: (b, 0, g)),
        compiler_params=_compiler_params(("parallel", "parallel")),
    )(q_in, k_in, v_in)


def group_norm1(x, gamma, beta, relu=False, eps=1e-5, out_dtype=jnp.bfloat16):
    """GroupNorm(num_groups=1) on NHWC input, two-sweep tiled (stats + normalize),
    fused optional ReLU, bf16 output."""
    B, H, W, C = x.shape
    M = H * W
    tr = M if M <= 2048 else 1024
    T = -(-M // tr)
    Mp = T * tr
    xf = x.reshape(B, M, C)
    if Mp != M:
        xf = jnp.pad(xf, ((0, 0), (0, Mp - M), (0, 0)))   # zero rows: no stat bias
    out = pl.pallas_call(
        functools.partial(_gn_kernel, eps=eps, relu=relu,
                          n_valid=float(M * C)),
        out_shape=jax.ShapeDtypeStruct((B, Mp, C), out_dtype),
        grid=(B, 2, T),
        in_specs=[
            pl.BlockSpec((1, tr, C), lambda b, p, t: (b, t, 0)),
            pl.BlockSpec((1, C), lambda b, p, t: (0, 0)),
            pl.BlockSpec((1, C), lambda b, p, t: (0, 0)),
        ],
        # pass 0 (stats): park on block (b,0,0) so nothing is written back;
        # pass 1 (normalize): write every row tile.
        out_specs=pl.BlockSpec((1, tr, C), lambda b, p, t: (b, p * t, 0)),
        scratch_shapes=[pltpu.VMEM((1, C), jnp.float32),
                        pltpu.VMEM((1, C), jnp.float32)],
        compiler_params=_compiler_params(("arbitrary", "arbitrary", "arbitrary")),
    )(xf, gamma.reshape(1, C).astype(jnp.float32),
      beta.reshape(1, C).astype(jnp.float32))
    if Mp != M:
        out = out[:, :M]
    return out.reshape(B, H, W, C)


def conv2d_3x3_replicate(x, w, b, activation="none", w2=None, b2=None,
                         out_dtype=jnp.bfloat16):
    """3x3 conv, stride 1, replicate padding, NHWC input, row-tiled grid.

    x: (B, H, W, C), w: (O, C, 3, 3) (PyTorch layout).  Optional fused
    post-activation 1x1 projection w2: (O, O2), b2: (O2,)."""
    B, H, W, C = x.shape
    O = w.shape[0]
    th = H if H <= 64 else 32
    n_t = -(-H // th)
    Hp = n_t * th
    xp = jnp.pad(x.astype(jnp.bfloat16), ((0, 0), (1, 1), (1, 1), (0, 0)),
                 mode="edge")
    if Hp != H:
        xp = jnp.pad(xp, ((0, 0), (0, Hp - H), (0, 0), (0, 0)))
    if n_t == 1:
        windows = xp[:, None]                              # (B, 1, H+2, W+2, C)
    else:
        windows = jnp.stack([xp[:, t * th:t * th + th + 2] for t in range(n_t)],
                            axis=1)                        # (B, n_t, th+2, W+2, C)
    wt = jnp.transpose(w, (2, 3, 1, 0)).reshape(9, C, O).astype(jnp.bfloat16)
    bias = b.reshape(1, O).astype(jnp.float32)

    win_spec = pl.BlockSpec((1, 1, th + 2, W + 2, C), lambda bb, t: (bb, t, 0, 0, 0))
    w_spec = pl.BlockSpec((9, C, O), lambda bb, t: (0, 0, 0))
    b_spec = pl.BlockSpec((1, O), lambda bb, t: (0, 0))

    if w2 is None:
        out_ch = O
        kernel = functools.partial(_conv3x3_kernel, th=th, width=W,
                                   activation=activation)
        in_specs = [win_spec, w_spec, b_spec]
        args = (windows, wt, bias)
    else:
        out_ch = w2.shape[1]
        kernel = functools.partial(_conv3x3_proj_kernel, th=th, width=W,
                                   activation=activation)
        in_specs = [win_spec, w_spec, b_spec,
                    pl.BlockSpec((O, out_ch), lambda bb, t: (0, 0)),
                    pl.BlockSpec((1, out_ch), lambda bb, t: (0, 0))]
        args = (windows, wt, bias, w2.astype(jnp.bfloat16),
                b2.reshape(1, out_ch).astype(jnp.float32))

    out = pl.pallas_call(
        kernel,
        out_shape=jax.ShapeDtypeStruct((B, n_t, th, W, out_ch), out_dtype),
        grid=(B, n_t),
        in_specs=in_specs,
        out_specs=pl.BlockSpec((1, 1, th, W, out_ch),
                               lambda bb, t: (bb, t, 0, 0, 0)),
        compiler_params=_compiler_params(("parallel", "parallel")),
    )(*args)
    out = out.reshape(B, Hp, W, out_ch)
    return out[:, :H] if Hp != H else out


def conv_transpose_2x2_s2(x, w, b, out_dtype=jnp.bfloat16):
    """ConvTranspose2d(k=2, s=2) on NHWC input; all 4 taps in ONE matmul."""
    B, H, W, C = x.shape
    O = w.shape[1]
    w_cat = jnp.concatenate([w[:, :, di, dj] for di in range(2) for dj in range(2)],
                            axis=1)                                 # (C, 4*O)
    b_cat = jnp.tile(b, 4)
    y = pallas_matmul(x.reshape(B * H * W, C), w_cat, b_cat, out_dtype=out_dtype)
    # TODO(synk): pixel-shuffle transpose below is one extra XLA HBM pass; could
    # be folded into the matmul out_spec or the following 3x3 conv.
    y = y.reshape(B, H, W, 2, 2, O).transpose(0, 1, 3, 2, 4, 5)
    return y.reshape(B, 2 * H, 2 * W, O)


# ----------------------------------------------------------------------------
# Resize / uv helpers
# ----------------------------------------------------------------------------

def _bilinear_src(in_size, out_size):
    scale = in_size / out_size
    src = np.maximum((np.arange(out_size) + 0.5) * scale - 0.5, 0.0)
    i0 = np.minimum(np.floor(src).astype(np.int64), in_size - 1)
    i1 = np.minimum(i0 + 1, in_size - 1)
    w1 = (src - i0).astype(np.float32)
    return i0, i1, w1


def _bilinear_matrix(in_size, out_size):
    """PyTorch bilinear (align_corners=False, no antialias) as a matrix."""
    i0, i1, w1 = _bilinear_src(in_size, out_size)
    m = np.zeros((out_size, in_size), np.float32)
    for i in range(out_size):
        m[i, i0[i]] += 1.0 - w1[i]
        m[i, i1[i]] += w1[i]
    return jnp.asarray(m)


def bilinear_resize_nhwc(x, out_h, out_w):
    """Separable bilinear resize: H via a channels-last Pallas matmul (no
    transposes), W via a 2-tap static gather + lerp."""
    B, H, W, C = x.shape
    Wh = _bilinear_matrix(H, out_h)                       # (OH, H)
    rows = [pallas_matmul(Wh, x[bi].reshape(H, W * C), out_dtype=jnp.bfloat16)
            for bi in range(B)]
    t = jnp.stack(rows, axis=0).reshape(B, out_h, W, C)
    j0, j1, wc = _bilinear_src(W, out_w)
    j0 = jnp.asarray(j0, jnp.int32)
    j1 = jnp.asarray(j1, jnp.int32)
    wc = jnp.asarray(wc)[None, None, :, None].astype(t.dtype)
    # TODO(synk): 2-tap column lerp left as XLA gather glue (2-sparse, not MXU work).
    return t[:, :, j0, :] * (1.0 - wc) + t[:, :, j1, :] * wc


def normalized_view_plane_uv(width, height, aspect_ratio):
    span_x = aspect_ratio / (1 + aspect_ratio ** 2) ** 0.5
    span_y = 1 / (1 + aspect_ratio ** 2) ** 0.5
    u = jnp.linspace(-span_x * (width - 1) / width, span_x * (width - 1) / width,
                     width, dtype=jnp.float32)
    v = jnp.linspace(-span_y * (height - 1) / height, span_y * (height - 1) / height,
                     height, dtype=jnp.float32)
    uu, vv = jnp.meshgrid(u, v, indexing="xy")            # (H, W)
    return jnp.stack([uu, vv], axis=-1)                   # (H, W, 2)


# ----------------------------------------------------------------------------
# Backbone (small synthetic DINOv2-style ViT) and Head
# ----------------------------------------------------------------------------

IMAGE_MEAN = jnp.array([0.485, 0.456, 0.406], jnp.float32)
IMAGE_STD = jnp.array([0.229, 0.224, 0.225], jnp.float32)


def transformer_block(x, p, num_heads):
    B, N, D = x.shape
    xf = x.reshape(B * N, D)
    # LayerNorm fused into the qkv matmul; bf16 output feeds attention directly.
    qkv = pallas_norm_matmul(xf, p["qkv_w"], p["qkv_b"], p["n1_g"], p["n1_b"],
                             eps=1e-6, out_dtype=jnp.bfloat16)
    o = pallas_attention_fused(qkv.reshape(B, N, 3 * D), num_heads, D)
    # Layer-scale folded into the projection weights (free at setup time).
    proj_w = p["proj_w"] * p["ls1"][None, :]
    proj_b = p["proj_b"] * p["ls1"]
    x = x + pallas_matmul(o.reshape(B * N, D), proj_w, proj_b,
                          out_dtype=jnp.bfloat16).reshape(B, N, D)
    # LayerNorm + GELU fused into the fc1 matmul; MLP hidden kept in bf16.
    h = pallas_norm_matmul(x.reshape(B * N, D), p["fc1_w"], p["fc1_b"],
                           p["n2_g"], p["n2_b"], eps=1e-6, activation="gelu",
                           out_dtype=jnp.bfloat16)
    fc2_w = p["fc2_w"] * p["ls2"][None, :]
    fc2_b = p["fc2_b"] * p["ls2"]
    x = x + pallas_matmul(h, fc2_w, fc2_b,
                          out_dtype=jnp.bfloat16).reshape(B, N, D)
    return x


def vit_backbone(image, p, num_heads, n_last, mean, std):
    """Returns raw patch tokens of the last n_last blocks (final norm is fused
    into the head projection kernel)."""
    # TODO(synk): small synthetic ViT stand-in for pretrained dinov2_vitb14
    # (same block structure; pos-embed interpolation omitted for fixed grid).
    B, C, H, W = image.shape
    ph, pw = H // 14, W // 14
    D = p["patch_w"].shape[1]
    # Fold (image - mean) / std into the patch-embedding weights and bias.
    inv_std_rows = jnp.repeat(1.0 / std, 14 * 14)                 # (C*196,)
    shift_rows = jnp.repeat(mean / std, 14 * 14)                  # (C*196,)
    patch_w_eff = p["patch_w"] * inv_std_rows[:, None]
    patch_b_eff = p["patch_b"] - shift_rows @ p["patch_w"]
    patches = image.reshape(B, C, ph, 14, pw, 14).transpose(0, 2, 4, 1, 3, 5)
    patches = patches.reshape(B * ph * pw, C * 14 * 14)
    tok = pallas_matmul(patches, patch_w_eff, patch_b_eff).reshape(B, ph * pw, D)
    cls = jnp.broadcast_to(p["cls_token"], (B, 1, D))
    x = jnp.concatenate([cls, tok], axis=1) + p["pos_embed"]
    outs = []
    for blk in p["blocks"]:
        x = transformer_block(x, blk, num_heads)
        outs.append(x)
    # cls tokens are unused by the head; only patch tokens are returned.
    return [o[:, 1:, :] for o in outs[-n_last:]]


def residual_conv_block(x, p):
    # NOTE: GroupNorm(num_groups=1) semantics (matches res_block_norm='layer_norm'
    # in ResidualConvBlock, which also builds GroupNorm(1, C)).
    h = group_norm1(x, p["gn1_g"], p["gn1_b"], relu=True)
    h = conv2d_3x3_replicate(h, p["conv1_w"], p["conv1_b"])
    h = group_norm1(h, p["gn2_g"], p["gn2_b"], relu=True)
    h = conv2d_3x3_replicate(h, p["conv2_w"], p["conv2_b"])
    return h + x


def head_forward(block_feats, norm_g, norm_b, img_h, img_w, p):
    patch_h, patch_w = img_h // 14, img_w // 14
    aspect = img_w / img_h
    B = block_feats[0].shape[0]
    # Fused: final LayerNorm + the 4 projections + feature sum (one kernel).
    x = fused_norm_project(block_feats, norm_g, norm_b, p["projects"])
    x = x.reshape(B, patch_h, patch_w, -1)                        # NHWC, bf16
    for ub in p["upsample_blocks"]:
        hh, ww = x.shape[1], x.shape[2]
        uv = normalized_view_plane_uv(ww, hh, aspect)[None].astype(x.dtype)
        uv = jnp.broadcast_to(uv, (B, hh, ww, 2))
        x = jnp.concatenate([x, uv], axis=-1)
        x = conv_transpose_2x2_s2(x, ub["deconv_w"], ub["deconv_b"])
        x = conv2d_3x3_replicate(x, ub["conv_w"], ub["conv_b"])
        x = residual_conv_block(x, ub["res"])
    x = bilinear_resize_nhwc(x, img_h, img_w)
    hh, ww = x.shape[1], x.shape[2]
    uv = normalized_view_plane_uv(ww, hh, aspect)[None].astype(x.dtype)
    uv = jnp.broadcast_to(uv, (B, hh, ww, 2))
    x = jnp.concatenate([x, uv], axis=-1)
    # Both output heads fused: stacked 3x3 conv + ReLU + block-diagonal 1x1
    # projection -> a single (B, H, W, 4) output (points 3 + mask 1).
    ob0, ob1 = p["output_blocks"]
    cc = ob0["conv1_w"].shape[0]
    d0 = ob0["conv2_w"].shape[1]
    d1 = ob1["conv2_w"].shape[1]
    w1 = jnp.concatenate([ob0["conv1_w"], ob1["conv1_w"]], axis=0)
    b1 = jnp.concatenate([ob0["conv1_b"], ob1["conv1_b"]], axis=0)
    w2 = jnp.zeros((2 * cc, d0 + d1), jnp.float32)
    w2 = w2.at[:cc, :d0].set(ob0["conv2_w"]).at[cc:, d0:].set(ob1["conv2_w"])
    b2 = jnp.concatenate([ob0["conv2_b"], ob1["conv2_b"]], axis=0)
    y = conv2d_3x3_replicate(x, w1, b1, activation="relu", w2=w2, b2=b2,
                             out_dtype=jnp.float32)
    points = y[..., :d0]                                          # (B, H, W, 3)
    mask = y[..., d0]                                             # (B, H, W)
    return points, mask


# ----------------------------------------------------------------------------
# MoGeModel.forward
# ----------------------------------------------------------------------------

def moge_forward(image, num_tokens, params, num_heads, intermediate_layers):
    B, _, oh, ow = image.shape
    resize_factor = (num_tokens * 14 ** 2 / (oh * ow)) ** 0.5
    rw, rh = int(ow * resize_factor), int(oh * resize_factor)
    # TODO(synk): bicubic+antialias resize not implemented; shapes are chosen so
    # (rh, rw) == (oh, ow) and the resize is exactly the identity.
    assert (rh, rw) == (oh, ow)
    h14, w14 = rh // 14 * 14, rw // 14 * 14
    assert (h14, w14) == (rh, rw)   # bilinear resize to multiple-of-14: identity
    # Image normalization is folded into the patch-embedding weights inside the
    # backbone (no separate normalize pass over the full image).
    feats = vit_backbone(image, params["backbone"], num_heads, intermediate_layers,
                         IMAGE_MEAN, IMAGE_STD)
    points, mask = head_forward(feats, params["backbone"]["norm_g"],
                                params["backbone"]["norm_b"], rh, rw,
                                params["head"])
    # F.interpolate(points/mask, (oh, ow), bilinear) is identity (same size);
    # remap_output == 'linear' -> identity; outputs already (B,H,W,3) / (B,H,W).
    return {"points": points, "mask": mask}


# ----------------------------------------------------------------------------
# Deterministic synthetic parameters
# ----------------------------------------------------------------------------

class ParamRng:
    def __init__(self, key):
        self._key = key

    def normal(self, shape, scale=0.02):
        self._key, sub = jax.random.split(self._key)
        return scale * jax.random.normal(sub, shape, dtype=jnp.float32)


def init_backbone_params(rng, dim, depth, num_patches):
    mlp = 4 * dim
    blocks = []
    for _ in range(depth):
        blocks.append(dict(
            n1_g=jnp.ones((dim,), jnp.float32), n1_b=jnp.zeros((dim,), jnp.float32),
            qkv_w=rng.normal((dim, 3 * dim)), qkv_b=rng.normal((3 * dim,)),
            proj_w=rng.normal((dim, dim)), proj_b=rng.normal((dim,)),
            ls1=jnp.ones((dim,), jnp.float32),
            n2_g=jnp.ones((dim,), jnp.float32), n2_b=jnp.zeros((dim,), jnp.float32),
            fc1_w=rng.normal((dim, mlp)), fc1_b=rng.normal((mlp,)),
            fc2_w=rng.normal((mlp, dim)), fc2_b=rng.normal((dim,)),
            ls2=jnp.ones((dim,), jnp.float32),
        ))
    return dict(
        patch_w=rng.normal((3 * 14 * 14, dim)), patch_b=rng.normal((dim,)),
        cls_token=rng.normal((1, 1, dim)),
        pos_embed=rng.normal((1, 1 + num_patches, dim)),
        blocks=blocks,
        norm_g=jnp.ones((dim,), jnp.float32), norm_b=jnp.zeros((dim,), jnp.float32),
    )


def init_head_params(rng, num_features, dim_in, dim_out, dim_proj, dim_upsample,
                     last_conv_channels):
    projects = [dict(w=rng.normal((dim_in, dim_proj)), b=rng.normal((dim_proj,)))
                for _ in range(num_features)]
    ups = []
    for in_ch, out_ch in zip([dim_proj] + dim_upsample[:-1], dim_upsample):
        w00 = rng.normal((in_ch + 2, out_ch, 1, 1))
        ups.append(dict(
            # replicate-kernel init, as in Head._make_upsampler
            deconv_w=jnp.tile(w00, (1, 1, 2, 2)),
            deconv_b=rng.normal((out_ch,)),
            conv_w=rng.normal((out_ch, out_ch, 3, 3)), conv_b=rng.normal((out_ch,)),
            res=dict(
                gn1_g=jnp.ones((out_ch,), jnp.float32),
                gn1_b=jnp.zeros((out_ch,), jnp.float32),
                conv1_w=rng.normal((out_ch, out_ch, 3, 3)), conv1_b=rng.normal((out_ch,)),
                gn2_g=jnp.ones((out_ch,), jnp.float32),
                gn2_b=jnp.zeros((out_ch,), jnp.float32),
                conv2_w=rng.normal((out_ch, out_ch, 3, 3)), conv2_b=rng.normal((out_ch,)),
            ),
        ))
    outs = []
    for d in dim_out:
        outs.append(dict(
            conv1_w=rng.normal((last_conv_channels, dim_upsample[-1] + 2, 3, 3)),
            conv1_b=rng.normal((last_conv_channels,)),
            conv2_w=rng.normal((last_conv_channels, d)),
            conv2_b=rng.normal((d,)),
        ))
    return dict(projects=projects, upsample_blocks=ups, output_blocks=outs)


# ----------------------------------------------------------------------------
# Main
# ----------------------------------------------------------------------------

if __name__ == "__main__":
    # Small config (defaults scaled down): dim_out=[3,1], num_res_blocks=1,
    # last_res_blocks=0, last_conv_size=1, res_block_norm='layer_norm',
    # remap_output='linear'.
    B = 2
    H = W = 28                 # original image size
    NUM_TOKENS = 4             # -> resize factor 1.0, 2x2 patch grid
    DIM_FEATURE = 64           # backbone width (stand-in for 768)
    DEPTH = 4
    NUM_HEADS = 4
    INTERMEDIATE_LAYERS = 4
    DIM_PROJ = 64
    DIM_UPSAMPLE = [32, 16, 16]
    LAST_CONV_CHANNELS = 16
    DIM_OUT = [3, 1]

    key = jax.random.PRNGKey(0)
    key_img, key_params = jax.random.split(key)
    image = jax.random.uniform(key_img, (B, 3, H, W), dtype=jnp.float32)

    rng = ParamRng(key_params)
    num_patches = (H // 14) * (W // 14)
    params = dict(
        backbone=init_backbone_params(rng, DIM_FEATURE, DEPTH, num_patches),
        head=init_head_params(rng, INTERMEDIATE_LAYERS, DIM_FEATURE, DIM_OUT,
                              DIM_PROJ, DIM_UPSAMPLE, LAST_CONV_CHANNELS),
    )

    out = moge_forward(image, NUM_TOKENS, params, NUM_HEADS, INTERMEDIATE_LAYERS)
    jax.block_until_ready((out["points"], out["mask"]))

    assert out["points"].shape == (B, H, W, 3)
    assert out["mask"].shape == (B, H, W)
    assert bool(jnp.all(jnp.isfinite(out["points"])))
    assert bool(jnp.all(jnp.isfinite(out["mask"])))
    print("KERNEL_OK")
</pallas_src>

<mosaic_0001>
module attributes {stable_mosaic.version = 11 : i64} {
  func.func @_mm_kernel(%arg0: i32, %arg1: i32, %arg2: i32, %arg3: memref<8x588xbf16, #tpu.memory_space<vmem>>, %arg4: memref<588x64xbf16, #tpu.memory_space<vmem>>, %arg5: memref<1x64xf32, #tpu.memory_space<vmem>>, %arg6: memref<8x64xf32, #tpu.memory_space<vmem>>, %arg7: memref<8x64xf32, #tpu.memory_space<vmem>>) attributes {dimension_semantics = [#tpu.dimension_semantics<parallel>, #tpu.dimension_semantics<parallel>, #tpu.dimension_semantics<arbitrary>], iteration_bounds = array<i64: 1, 1, 1>, scalar_prefetch = 0 : i64, scratch_operands = 1 : i64, tpu.core_type = #tpu.core_type<tc>, window_params = [{transform_indices = @transform_0, window_bounds = array<i64: 8, 588>}, {transform_indices = @transform_1, window_bounds = array<i64: 588, 64>}, {transform_indices = @transform_2, window_bounds = array<i64: 1, 64>}, {transform_indices = @transform_3, window_bounds = array<i64: 8, 64>}]} {
    %c0_i32 = arith.constant 0 : i32
    %0 = arith.cmpi eq, %arg2, %c0_i32 : i32
    %1 = arith.extui %0 : i1 to i32
    %c0_i32_0 = arith.constant 0 : i32
    %2 = arith.cmpi ne, %1, %c0_i32_0 : i32
    scf.if %2 {
      %cst_10 = arith.constant 0.000000e+00 : f32
      %12 = vector.broadcast %cst_10 : f32 to vector<8x64xf32>
      %c0_11 = arith.constant 0 : index
      %c0_12 = arith.constant 0 : index
      %13 = vector.load %arg7[%c0_11, %c0_12] : memref<8x64xf32, #tpu.memory_space<vmem>>, vector<8x64xf32>
      tpu.vector_store %arg7[%c0_11, %c0_12], %12 {strides = array<i32>} : memref<8x64xf32, #tpu.memory_space<vmem>>, vector<8x64xf32>,
    } else {
    }
    %c0 = arith.constant 0 : index
    %c0_1 = arith.constant 0 : index
    %3 = vector.load %arg7[%c0, %c0_1] : memref<8x64xf32, #tpu.memory_space<vmem>>, vector<8x64xf32>
    %c0_2 = arith.constant 0 : index
    %c0_3 = arith.constant 0 : index
    %4 = vector.load %arg3[%c0_2, %c0_3] : memref<8x588xbf16, #tpu.memory_space<vmem>>, vector<8x588xbf16>
    %c0_4 = arith.constant 0 : index
    %c0_5 = arith.constant 0 : index
    %5 = vector.load %arg4[%c0_4, %c0_5] : memref<588x64xbf16, #tpu.memory_space<vmem>>, vector<588x64xbf16>
    %cst = arith.constant dense<0.000000e+00> : vector<8x64xf32>
    %6 = tpu.matmul %4, %5, %cst {dimension_numbers = #tpu.dot_dimension_numbers<[1], [0], [0], [1], [0, 0, 1, 1], [], []>} : vector<8x588xbf16>, vector<588x64xbf16>, vector<8x64xf32> -> vector<8x64xf32>
    %7 = arith.addf %3, %6 : vector<8x64xf32>
    %c0_6 = arith.constant 0 : index
    %c0_7 = arith.constant 0 : index
    %8 = vector.load %arg7[%c0_6, %c0_7] : memref<8x64xf32, #tpu.memory_space<vmem>>, vector<8x64xf32>
    tpu.vector_store %arg7[%c0_6, %c0_7], %7 {strides = array<i32>} : memref<8x64xf32, #tpu.memory_space<vmem>>, vector<8x64xf32>,
    %c0_i32_8 = arith.constant 0 : i32
    %9 = arith.cmpi eq, %arg2, %c0_i32_8 : i32
    %10 = arith.extui %9 : i1 to i32
    %c0_i32_9 = arith.constant 0 : i32
    %11 = arith.cmpi ne, %10, %c0_i32_9 : i32
    scf.if %11 {
      %c0_10 = arith.constant 0 : index
      %c0_11 = arith.constant 0 : index
      %12 = vector.load %arg7[%c0_10, %c0_11] : memref<8x64xf32, #tpu.memory_space<vmem>>, vector<8x64xf32>
      %c0_12 = arith.constant 0 : index
      %c0_13 = arith.constant 0 : index
      %13 = vector.load %arg5[%c0_12, %c0_13] : memref<1x64xf32, #tpu.memory_space<vmem>>, vector<1x64xf32>
      %14 = vector.broadcast %13 : vector<1x64xf32> to vector<8x64xf32>
      %15 = arith.addf %12, %14 : vector<8x64xf32>
      %c0_14 = arith.constant 0 : index
      %c0_15 = arith.constant 0 : index
      %16 = vector.load %arg6[%c0_14, %c0_15] : memref<8x64xf32, #tpu.memory_space<vmem>>, vector<8x64xf32>
      tpu.vector_store %arg6[%c0_14, %c0_15], %15 {strides = array<i32>} : memref<8x64xf32, #tpu.memory_space<vmem>>, vector<8x64xf32>,
    } else {
    }
    return
  }
  func.func @transform_0(%arg0: i32, %arg1: i32, %arg2: i32) -> (i32, i32) {
    %c0_i32 = arith.constant 0 : i32
    return %arg0, %arg2 : i32, i32
  }
  func.func @transform_1(%arg0: i32, %arg1: i32, %arg2: i32) -> (i32, i32) {
    %c0_i32 = arith.constant 0 : i32
    return %arg2, %arg1 : i32, i32
  }
  func.func @transform_2(%arg0: i32, %arg1: i32, %arg2: i32) -> (i32, i32) {
    %c0_i32 = arith.constant 0 : i32
    %c0_i32_0 = arith.constant 0 : i32
    return %c0_i32, %arg1 : i32, i32
  }
  func.func @transform_3(%arg0: i32, %arg1: i32, %arg2: i32) -> (i32, i32) {
    %c0_i32 = arith.constant 0 : i32
    return %arg0, %arg1 : i32, i32
  }
}

</mosaic_0001>

<llo_original>
// kernel: tpu_custom_call.1
$region0: #{tpu_custom_call.1}
  #allocation0 [shape = 'u32[]', space=smem, size = 0x4, offset = 0x4, fixed_abs, tag = 'smem constant byte address 0x4 - core index']
  #allocation1 [shape = 'u32[144,128]{1,0:T(1,128)}', space=vmem, size = 0x12000, scoped, tag = 'internal scratch']
  #allocation2 [shape = 'f32[8,64]{1,0:T(8,128)}', space=vmem, size = 0x1000, scoped, tag = 'scratch operand']
  %s0 = inlined_call_operand.vmem [shape: bf16[8,588], index: 0, kind: input, shape index: {}]
  %s1 = inlined_call_operand.vmem [shape: bf16[588,64], index: 1, kind: input, shape index: {}]
  %s2 = inlined_call_operand.vmem [shape: f32[1,64], index: 2, kind: input, shape index: {}]
  %s3 = inlined_call_operand.hbm [shape: f32[8,64], index: 3, kind: output, shape index: {}]
  %s4 = sld [smem:[#allocation0]]
  $region30: #{tpu_custom_call.1} parent=0
    _
  %s6 = ssub.s32 1, %s4
  %s7 = scalar_select 0, %s6, %s4
  $region1: #{tpu_custom_call.1} parent=0
    #allocation3 [shape = 'u8[4096]{0}', space=vmem, size = 0x1000, scoped, tag = 'output window, operand 0, single buffered']
    #allocation4 [shape = 's32[1]{0}', space=sflag, size = 0x4, scoped, tag = 'scoped memory for tpu_custom_call.1']
    %8 = vsyncpa [#allocation4], 0
    // Predicated region
    $region2: #{tpu_custom_call.1} parent=1 // pred_check
      _
    $region3: #{tpu_custom_call.1} parent=1 // pred_check_branch
      %10 = sbr.rel (0) target = $region5
    $region4: #{tpu_custom_call.1} parent=1 // pred_region
      _
    $region5: #{tpu_custom_call.1} parent=1 // pred_fallthru
      _
    // Predicated region
    $region6: #{tpu_custom_call.1} parent=1 // pred_check
      _
    $region7: #{tpu_custom_call.1} parent=1 // pred_check_branch
      %12 = sbr.rel (0) target = $region9
    $region8: #{tpu_custom_call.1} parent=1 // pred_region
      _
    $region9: #{tpu_custom_call.1} parent=1 // pred_fallthru
      _
    // Predicated region
    $region10: #{tpu_custom_call.1} parent=1 // pred_check
      _
    $region11: #{tpu_custom_call.1} parent=1 // pred_check_branch
      %14 = sbr.rel (0) target = $region13
    $region12: #{tpu_custom_call.1} parent=1 // pred_region
      _
    $region13: #{tpu_custom_call.1} parent=1 // pred_fallthru
      _
    %p16 = scmp.eq.s32.totalorder 0, 0
    // Predicated region
    $region14: #{tpu_custom_call.1} parent=1 // pred_check
      %p17 = pneg %p16
    $region15: #{tpu_custom_call.1} parent=1 // pred_check_branch
      %19 = sbr.rel (%p17) target = $region17
    $region16: #{tpu_custom_call.1} parent=1 // pred_region
      %vm20 = vcmask 523264
      %21 = vst.msk [vmem:[#allocation2] sm:$0xff] %vm20, 0.0
    $region17: #{tpu_custom_call.1} parent=1 // pred_fallthru
      _
    %v22 = vld [vmem:[#allocation2] sm:$0xff]
    %v23 = vld [vmem:[%s0] sm:$0xff]
    %v24 = vld [vmem:[%s0 + $0x8] sm:$0xff]
    %v25 = vld [vmem:[%s0 + $0x10] sm:$0xf]
    %v26 = vld [vmem:[%s1] sm:$0xf]
    %v27 = vld [vmem:[%s1 + $0x4] sm:$0xf]
    %v28 = vld [vmem:[%s1 + $0x8] sm:$0xf]
    %v29 = vld [vmem:[%s1 + $0xc] sm:$0xf]
    %v30 = vld [vmem:[%s1 + $0x10] sm:$0xf]
    %v31 = vld [vmem:[%s1 + $0x14] sm:$0xf]
    %v32 = vld [vmem:[%s1 + $0x18] sm:$0xf]
    %v33 = vld [vmem:[%s1 + $0x1c] sm:$0xf]
    %v34 = vld [vmem:[%s1 + $0x20] sm:$0xf]
    %v35 = vld [vmem:[%s1 + $0x24] sm:$0xf]
    %v36 = vld [vmem:[%s1 + $0x28] sm:$0xf]
    %v37 = vld [vmem:[%s1 + $0x2c] sm:$0xf]
    %v38 = vld [vmem:[%s1 + $0x30] sm:$0xf]
    %v39 = vld [vmem:[%s1 + $0x34] sm:$0xf]
    %v40 = vld [vmem:[%s1 + $0x38] sm:$0xf]
    %v41 = vld [vmem:[%s1 + $0x3c] sm:$0xf]
    %v42 = vld [vmem:[%s1 + $0x40] sm:$0xf]
    %v43 = vld [vmem:[%s1 + $0x44] sm:$0xf]
    %v44 = vld [vmem:[%s1 + $0x48] sm:$0xf]
    %v45 = vld [vmem:[%s1 + $0x4c] sm:$0xf]
    %v46 = vld [vmem:[%s1 + $0x50] sm:$0xf]
    %v47 = vld [vmem:[%s1 + $0x54] sm:$0xf]
    %v48 = vld [vmem:[%s1 + $0x58] sm:$0xf]
    %v49 = vld [vmem:[%s1 + $0x5c] sm:$0xf]
    %v50 = vld [vmem:[%s1 + $0x60] sm:$0xf]
    %v51 = vld [vmem:[%s1 + $0x64] sm:$0xf]
    %v52 = vld [vmem:[%s1 + $0x68] sm:$0xf]
    %v53 = vld [vmem:[%s1 + $0x6c] sm:$0xf]
    %v54 = vld [vmem:[%s1 + $0x70] sm:$0xf]
    %v55 = vld [vmem:[%s1 + $0x74] sm:$0xf]
    %v56 = vld [vmem:[%s1 + $0x78] sm:$0xf]
    %v57 = vld [vmem:[%s1 + $0x7c] sm:$0xf]
    %v58 = vld [vmem:[%s1 + $0x80] sm:$0xf]
    %v59 = vld [vmem:[%s1 + $0x84] sm:$0xf]
    %v60 = vld [vmem:[%s1 + $0x88] sm:$0xf]
    %v61 = vld [vmem:[%s1 + $0x8c] sm:$0xf]
    %v62 = vld [vmem:[%s1 + $0x90] sm:$0xf]
    %v63 = vld [vmem:[%s1 + $0x94] sm:$0xf]
    %v64 = vld [vmem:[%s1 + $0x98] sm:$0xf]
    %v65 = vld [vmem:[%s1 + $0x9c] sm:$0xf]
    %v66 = vld [vmem:[%s1 + $0xa0] sm:$0xf]
    %v67 = vld [vmem:[%s1 + $0xa4] sm:$0xf]
    %v68 = vld [vmem:[%s1 + $0xa8] sm:$0xf]
    %v69 = vld [vmem:[%s1 + $0xac] sm:$0xf]
    %v70 = vld [vmem:[%s1 + $0xb0] sm:$0xf]
    %v71 = vld [vmem:[%s1 + $0xb4] sm:$0xf]
    %v72 = vld [vmem:[%s1 + $0xb8] sm:$0xf]
    %v73 = vld [vmem:[%s1 + $0xbc] sm:$0xf]
    %v74 = vld [vmem:[%s1 + $0xc0] sm:$0xf]
    %v75 = vld [vmem:[%s1 + $0xc4] sm:$0xf]
    %v76 = vld [vmem:[%s1 + $0xc8] sm:$0xf]
    %v77 = vld [vmem:[%s1 + $0xcc] sm:$0xf]
    %v78 = vld [vmem:[%s1 + $0xd0] sm:$0xf]
    %v79 = vld [vmem:[%s1 + $0xd4] sm:$0xf]
    %v80 = vld [vmem:[%s1 + $0xd8] sm:$0xf]
    %v81 = vld [vmem:[%s1 + $0xdc] sm:$0xf]
    %v82 = vld [vmem:[%s1 + $0xe0] sm:$0xf]
    %v83 = vld [vmem:[%s1 + $0xe4] sm:$0xf]
    %v84 = vld [vmem:[%s1 + $0xe8] sm:$0xf]
    %v85 = vld [vmem:[%s1 + $0xec] sm:$0xf]
    %v86 = vld [vmem:[%s1 + $0xf0] sm:$0xf]
    %v87 = vld [vmem:[%s1 + $0xf4] sm:$0xf]
    %v88 = vld [vmem:[%s1 + $0xf8] sm:$0xf]
    %v89 = vld [vmem:[%s1 + $0xfc] sm:$0xf]
    %v90 = vld [vmem:[%s1 + $0x100] sm:$0xf]
    %v91 = vld [vmem:[%s1 + $0x104] sm:$0xf]
    %v92 = vld [vmem:[%s1 + $0x108] sm:$0xf]
    %v93 = vld [vmem:[%s1 + $0x10c] sm:$0xf]
    %v94 = vld [vmem:[%s1 + $0x110] sm:$0xf]
    %v95 = vld [vmem:[%s1 + $0x114] sm:$0xf]
    %v96 = vld [vmem:[%s1 + $0x118] sm:$0xf]
    %v97 = vld [vmem:[%s1 + $0x11c] sm:$0xf]
    %v98 = vld [vmem:[%s1 + $0x120] sm:$0xf]
    %v99 = vld [vmem:[%s1 + $0x124] sm:$0x3]
    %v103 = vunpack.c.l.b16 %v23
    %v104 = vunpack.c.h.b16 %v23
    %v105 = vunpack.c.l.b16 %v24
    %v106 = vunpack.c.h.b16 %v24
    %v107 = vunpack.c.l.b16 %v25
    %v108 = vpack.c.b16 %v103, %v103
    %v109 = vpack.c.b16 %v104, %v104
    %v110 = vpack.c.b16 %v105, %v105
    %v111 = vpack.c.b16 %v106, %v106
    %v112 = vpack.c.b16 %v107, %v107
    %v191 = vunpack.c.l.b16 %v26
    %v192 = vunpack.c.l.b16 %v27
    %v193 = vunpack.c.l.b16 %v28
    %v194 = vunpack.c.l.b16 %v29
    %v195 = vunpack.c.l.b16 %v30
    %v196 = vunpack.c.l.b16 %v31
    %v197 = vunpack.c.l.b16 %v32
    %v198 = vunpack.c.l.b16 %v33
    %v199 = vunpack.c.l.b16 %v34
    %v200 = vunpack.c.l.b16 %v35
    %v201 = vunpack.c.l.b16 %v36
    %v202 = vunpack.c.l.b16 %v37
    %v203 = vunpack.c.l.b16 %v38
    %v204 = vunpack.c.l.b16 %v39
    %v205 = vunpack.c.l.b16 %v40
    %v206 = vunpack.c.l.b16 %v41
    %v207 = vunpack.c.l.b16 %v42
    %v208 = vunpack.c.l.b16 %v43
    %v209 = vunpack.c.l.b16 %v44
    %v210 = vunpack.c.l.b16 %v45
    %v211 = vunpack.c.l.b16 %v46
    %v212 = vunpack.c.l.b16 %v47
    %v213 = vunpack.c.l.b16 %v48
    %v214 = vunpack.c.l.b16 %v49
    %v215 = vunpack.c.l.b16 %v50
    %v216 = vunpack.c.l.b16 %v51
    %v217 = vunpack.c.l.b16 %v52
    %v218 = vunpack.c.l.b16 %v53
    %v219 = vunpack.c.l.b16 %v54
    %v220 = vunpack.c.l.b16 %v55
    %v221 = vunpack.c.l.b16 %v56
    %v222 = vunpack.c.l.b16 %v57
    %v223 = vunpack.c.l.b16 %v58
    %v224 = vunpack.c.l.b16 %v59
    %v225 = vunpack.c.l.b16 %v60
    %v226 = vunpack.c.l.b16 %v61
    %v227 = vunpack.c.l.b16 %v62
    %v228 = vunpack.c.l.b16 %v63
    %v229 = vunpack.c.l.b16 %v64
    %v230 = vunpack.c.l.b16 %v65
    %v231 = vunpack.c.l.b16 %v66
    %v232 = vunpack.c.l.b16 %v67
    %v233 = vunpack.c.l.b16 %v68
    %v234 = vunpack.c.l.b16 %v69
    %v235 = vunpack.c.l.b16 %v70
    %v236 = vunpack.c.l.b16 %v71
    %v237 = vunpack.c.l.b16 %v72
    %v238 = vunpack.c.l.b16 %v73
    %v239 = vunpack.c.l.b16 %v74
    %v240 = vunpack.c.l.b16 %v75
    %v241 = vunpack.c.l.b16 %v76
    %v242 = vunpack.c.l.b16 %v77
    %v243 = vunpack.c.l.b16 %v78
    %v244 = vunpack.c.l.b16 %v79
    %v245 = vunpack.c.l.b16 %v80
    %v246 = vunpack.c.l.b16 %v81
    %v247 = vunpack.c.l.b16 %v82
    %v248 = vunpack.c.l.b16 %v83
    %v249 = vunpack.c.l.b16 %v84
    %v250 = vunpack.c.l.b16 %v85
    %v251 = vunpack.c.l.b16 %v86
    %v252 = vunpack.c.l.b16 %v87
    %v253 = vunpack.c.l.b16 %v88
    %v254 = vunpack.c.l.b16 %v89
    %v255 = vunpack.c.l.b16 %v90
    %v256 = vunpack.c.l.b16 %v91
    %v257 = vunpack.c.l.b16 %v92
    %v258 = vunpack.c.l.b16 %v93
    %v259 = vunpack.c.l.b16 %v94
    %v260 = vunpack.c.l.b16 %v95
    %v261 = vunpack.c.l.b16 %v96
    %v262 = vunpack.c.l.b16 %v97
    %v263 = vunpack.c.l.b16 %v98
    %v264 = vunpack.c.l.b16 %v99
    %v265 = vpack.c.b16 %v192, %v191
    %v266 = vpack.c.b16 %v194, %v193
    %v267 = vpack.c.b16 %v196, %v195
    %v268 = vpack.c.b16 %v198, %v197
    %v269 = vpack.c.b16 %v200, %v199
    %v270 = vpack.c.b16 %v202, %v201
    %v271 = vpack.c.b16 %v204, %v203
    %v272 = vpack.c.b16 %v206, %v205
    %v273 = vpack.c.b16 %v208, %v207
    %v274 = vpack.c.b16 %v210, %v209
    %v275 = vpack.c.b16 %v212, %v211
    %v276 = vpack.c.b16 %v214, %v213
    %v277 = vpack.c.b16 %v216, %v215
    %v278 = vpack.c.b16 %v218, %v217
    %v279 = vpack.c.b16 %v220, %v219
    %v280 = vpack.c.b16 %v222, %v221
    %v281 = vpack.c.b16 %v224, %v223
    %v282 = vpack.c.b16 %v226, %v225
    %v283 = vpack.c.b16 %v228, %v227
    %v284 = vpack.c.b16 %v230, %v229
    %v285 = vpack.c.b16 %v232, %v231
    %v286 = vpack.c.b16 %v234, %v233
    %v287 = vpack.c.b16 %v236, %v235
    %v288 = vpack.c.b16 %v238, %v237
    %v289 = vpack.c.b16 %v240, %v239
    %v290 = vpack.c.b16 %v242, %v241
    %v291 = vpack.c.b16 %v244, %v243
    %v292 = vpack.c.b16 %v246, %v245
    %v293 = vpack.c.b16 %v248, %v247
    %v294 = vpack.c.b16 %v250, %v249
    %v295 = vpack.c.b16 %v252, %v251
    %v296 = vpack.c.b16 %v254, %v253
    %v297 = vpack.c.b16 %v256, %v255
    %v298 = vpack.c.b16 %v258, %v257
    %v299 = vpack.c.b16 %v260, %v259
    %v300 = vpack.c.b16 %v262, %v261
    %v301 = vpack.c.b16 %v264, %v263
    %vm338 = vcmask 621568
    %v340 = vsel %vm338, %v112, 0
    %vm342 = vcmask 1045504
    %v344 = vsel %vm342, %v301, 0
    %346 = vmatprep.subr.bf16.mxu0 0
    %347 = vmatpush1.bf16.msra.mxu0 %v272
    %348 = vmatprep.subr.bf16.mxu0 0
    %349 = vmatpush1.bf16.msra.mxu0 %v271
    %350 = vmatprep.subr.bf16.mxu0 0
    %351 = vmatpush1.bf16.msra.mxu0 %v270
    %352 = vmatprep.subr.bf16.mxu0 0
    %353 = vmatpush1.bf16.msra.mxu0 %v269
    %354 = vmatprep.subr.bf16.mxu0 0
    %355 = vmatpush1.bf16.msra.mxu0 %v268
    %356 = vmatprep.subr.bf16.mxu0 0
    %357 = vmatpush1.bf16.msra.mxu0 %v267
    %358 = vmatprep.subr.bf16.mxu0 0
    %359 = vmatpush1.bf16.msra.mxu0 %v266
    %360 = vmatprep.subr.bf16.mxu0 0
    %361 = vmatpush1.bf16.msra.mxu0 %v265
    %362 = vmatprep.subr.bf16.mxu0 0
    %363 = vmatpush2.bf16.msra.mxu0 %v280
    %364 = vmatprep.subr.bf16.mxu0 0
    %365 = vmatpush2.bf16.msra.mxu0 %v279
    %366 = vmatprep.subr.bf16.mxu0 0
    %367 = vmatpush2.bf16.msra.mxu0 %v278
    %368 = vmatprep.subr.bf16.mxu0 0
    %369 = vmatpush2.bf16.msra.mxu0 %v277
    %370 = vmatprep.subr.bf16.mxu0 0
    %371 = vmatpush2.bf16.msra.mxu0 %v276
    %372 = vmatprep.subr.bf16.mxu0 0
    %373 = vmatpush2.bf16.msra.mxu0 %v275
    %374 = vmatprep.subr.bf16.mxu0 0
    %375 = vmatpush2.bf16.msra.mxu0 %v274
    %376 = vmatprep.subr.bf16.mxu0 0
    %377 = vmatpush2.bf16.msra.mxu0 %v273
    %378 = vmatprep.mubr.bf16.mxu0 %v109
    %379 = vmatmul.mubr.bf16.gmra.mxu0 %v108
    %v380 = vpop.f32.mrf.mxu0
    %v381 = vadd.f32 0.0, %v380
    %v382 = vpop.f32.mrf.mxu0
    %v383 = vpop.f32.mrf.mxu0
    %v384 = vpop.f32.mrf.mxu0
    %385 = vdwg.mxu0
    %386 = vmatprep.subr.bf16.mxu0 0
    %387 = vmatpush1.bf16.msra.mxu0 %v288
    %388 = vmatprep.subr.bf16.mxu0 0
    %389 = vmatpush1.bf16.msra.mxu0 %v287
    %390 = vmatprep.subr.bf16.mxu0 0
    %391 = vmatpush1.bf16.msra.mxu0 %v286
    %392 = vmatprep.subr.bf16.mxu0 0
    %393 = vmatpush1.bf16.msra.mxu0 %v285
    %394 = vmatprep.subr.bf16.mxu0 0
    %395 = vmatpush1.bf16.msra.mxu0 %v284
    %396 = vmatprep.subr.bf16.mxu0 0
    %397 = vmatpush1.bf16.msra.mxu0 %v283
    %398 = vmatprep.subr.bf16.mxu0 0
    %399 = vmatpush1.bf16.msra.mxu0 %v282
    %400 = vmatprep.subr.bf16.mxu0 0
    %401 = vmatpush1.bf16.msra.mxu0 %v281
    %402 = vmatprep.subr.bf16.mxu0 0
    %403 = vmatpush2.bf16.msra.mxu0 %v296
    %404 = vmatprep.subr.bf16.mxu0 0
    %405 = vmatpush2.bf16.msra.mxu0 %v295
    %406 = vmatprep.subr.bf16.mxu0 0
    %407 = vmatpush2.bf16.msra.mxu0 %v294
    %408 = vmatprep.subr.bf16.mxu0 0
    %409 = vmatpush2.bf16.msra.mxu0 %v293
    %410 = vmatprep.subr.bf16.mxu0 0
    %411 = vmatpush2.bf16.msra.mxu0 %v292
    %412 = vmatprep.subr.bf16.mxu0 0
    %413 = vmatpush2.bf16.msra.mxu0 %v291
    %414 = vmatprep.subr.bf16.mxu0 0
    %415 = vmatpush2.bf16.msra.mxu0 %v290
    %416 = vmatprep.subr.bf16.mxu0 0
    %417 = vmatpush2.bf16.msra.mxu0 %v289
    %418 = vmatprep.mubr.bf16.mxu0 %v111
    %419 = vmatmul.mubr.bf16.gmra.mxu0 %v110
    %v420 = vpop.f32.mrf.mxu0
    %v421 = vadd.f32 %v381, %v420
    %v422 = vpop.f32.mrf.mxu0
    %v423 = vpop.f32.mrf.mxu0
    %v424 = vpop.f32.mrf.mxu0
    %425 = vdwg.mxu0
    %426 = vmatprep.subr.bf16.mxu0 0
    %427 = vmatpush1.bf16.msra.mxu0 0
    %428 = vmatprep.subr.bf16.mxu0 0
    %429 = vmatpush1.bf16.msra.mxu0 0
    %430 = vmatprep.subr.bf16.mxu0 0
    %431 = vmatpush1.bf16.msra.mxu0 0
    %432 = vmatprep.subr.bf16.mxu0 0
    %433 = vmatpush1.bf16.msra.mxu0 %v344
    %434 = vmatprep.subr.bf16.mxu0 0
    %435 = vmatpush1.bf16.msra.mxu0 %v300
    %436 = vmatprep.subr.bf16.mxu0 0
    %437 = vmatpush1.bf16.msra.mxu0 %v299
    %438 = vmatprep.subr.bf16.mxu0 0
    %439 = vmatpush1.bf16.msra.mxu0 %v298
    %440 = vmatprep.subr.bf16.mxu0 0
    %441 = vmatpush1.bf16.msra.mxu0 %v297
    %442 = vmatprep.subr.bf16.mxu0 0
    %443 = vmatpush2.bf16.msra.mxu0 0
    %444 = vmatprep.subr.bf16.mxu0 0
    %445 = vmatpush2.bf16.msra.mxu0 0
    %446 = vmatprep.subr.bf16.mxu0 0
    %447 = vmatpush2.bf16.msra.mxu0 0
    %448 = vmatprep.subr.bf16.mxu0 0
    %449 = vmatpush2.bf16.msra.mxu0 0
    %450 = vmatprep.subr.bf16.mxu0 0
    %451 = vmatpush2.bf16.msra.mxu0 0
    %452 = vmatprep.subr.bf16.mxu0 0
    %453 = vmatpush2.bf16.msra.mxu0 0
    %454 = vmatprep.subr.bf16.mxu0 0
    %455 = vmatpush2.bf16.msra.mxu0 0
    %456 = vmatprep.subr.bf16.mxu0 0
    %457 = vmatpush2.bf16.msra.mxu0 0
    %458 = vmatprep.mubr.bf16.mxu0 0
    %459 = vmatmul.mubr.bf16.gmra.mxu0 %v340
    %v460 = vpop.f32.mrf.mxu0
    %v461 = vadd.f32 %v421, %v460
    %v462 = vpop.f32.mrf.mxu0
    %v463 = vpop.f32.mrf.mxu0
    %v464 = vpop.f32.mrf.mxu0
    %465 = vdwg.mxu0
    %v466 = vadd.f32 %v22, %v461
    %vm467 = vcmask 523264
    %468 = vst.msk [vmem:[#allocation2] sm:$0xff] %vm467, %v466
    // Predicated region
    $region18: #{tpu_custom_call.1} parent=1 // pred_check
      %p469 = pneg %p16
    $region19: #{tpu_custom_call.1} parent=1 // pred_check_branch
      %471 = sbr.rel (%p469) target = $region21
    $region20: #{tpu_custom_call.1} parent=1 // pred_region
      %v472 = vld [vmem:[#allocation2] sm:$0xff]
      %v473 = vld [vmem:[%s2] sm:$0x1]
      %v475 = vlaneseq
      %v476 = vshrl.u32 %v475, 7
      %v477 = vsub.s32 0, %v476
      %v478 = vrot.slane %v473, %v477
      %v480 = vadd.f32 %v472, %v478
      %481 = vst.msk [vmem:[#allocation3] sm:$0xff] %vm467, %v480
    $region21: #{tpu_custom_call.1} parent=1 // pred_fallthru
      _
    // Predicated region
    $region22: #{tpu_custom_call.1} parent=1 // pred_check
      _
    $region23: #{tpu_custom_call.1} parent=1 // pred_check_branch
      %483 = sbr.rel (0) target = $region25
    $region24: #{tpu_custom_call.1} parent=1 // pred_region
      %s485 = ssub.s32 128, 128
      %486 = vsyncadd [#allocation4], %s485
      %s488 = sshll.u32 [#allocation3], 4
      %s489 = int_to_ptr.vmem [resolvable:$true] %s488
      %491 = dma.vmem_to_hbm [thread:$0]  %s489, 128, %s3, [#allocation4]
    $region25: #{tpu_custom_call.1} parent=1 // pred_fallthru
      _
    // Predicated region
    $region26: #{tpu_custom_call.1} parent=1 // pred_check
      _
    $region27: #{tpu_custom_call.1} parent=1 // pred_check_branch
      %493 = sbr.rel (0) target = $region29
    $region28: #{tpu_custom_call.1} parent=1 // pred_region
      %494 = dma.done [#allocation4], 128
    $region29: #{tpu_custom_call.1} parent=1 // pred_fallthru
      _
    %495 = vsyncpa [#allocation4], 1

</llo_original>
